<compile_context>
chip_gen: v5e
topology: v5e:2x2
jax: 0.10.0
libtpu: 0.0.40
codegen_flags: <defaults>
</compile_context>

<pallas_src>
import jax
import jax.numpy as jnp
from jax.experimental import pallas as pl
from jax.experimental.pallas import tpu as pltpu


def _round_up(x, m):
    return (x + m - 1) // m * m


def _vmem_phys_bytes():
    """Physical VMEM per TensorCore; conservative 64 MiB (v7x) fallback."""
    try:
        cap = int(getattr(pltpu.get_tpu_info(), "vmem_capacity_bytes", 0) or 0)
        if cap >= (32 << 20):
            return cap
    except Exception:
        pass
    return 64 << 20


def _fit_tiles(M, Dp, tm_req, tn_cap, sub, x_bytes, w_bytes, o_bytes, budget):
    """Pick (tm, tn, weight_buffers, vmem_need) so pipelined buffers fit budget."""

    def need(tm, tn, wbuf):
        lhs = 2 * tm * Dp * x_bytes           # double-buffered LHS row block
        wgt = wbuf * Dp * tn * w_bytes        # weight column stripe(s)
        bias = wbuf * 8 * tn * w_bytes        # bias stripe (sublane-padded)
        out = 2 * tm * tn * o_bytes           # double-buffered output block
        return lhs + wgt + bias + out

    tm = _round_up(tm_req, sub)
    if tm >= M:
        tm = M                                # full-dim row block is always legal

    # Stripe candidates: multiples of 128 dividing Dp (a divisor keeps the
    # in-kernel residual slice inside the LHS block), widest first.
    cands = [t for t in range(Dp, 0, -128)
             if Dp % t == 0 and (tn_cap is None or t <= tn_cap)]
    if not cands:
        cands = [128]

    tn = None
    while True:
        tn = next((t for t in cands if need(tm, t, 1) <= budget), None)
        if tn is not None or tm <= sub:
            break
        tm = max(sub, _round_up(tm // 2, sub))
    if tn is None:
        # TODO(synk): for very large D add a K grid axis ((tm,tk)x(tk,tn)
        # blocks + f32 VMEM accumulator via pl.when) so VMEM use is bounded
        # independent of D instead of holding a full-Dp LHS row + stripe.
        tn = cands[-1]

    n_stripes = Dp // tn
    wbuf = 2 if (n_stripes > 1 and need(tm, tn, 2) <= budget) else 1
    return tm, tn, wbuf, need(tm, tn, wbuf)


def residual_linear(x, w, b, *, tm=None, tn=None):
    """Fused Residual(Linear): (x @ w + b) + x.

    x: (B, S, D); w: (D, D); b: (D,). Returns (B, S, D) in x.dtype.
    """
    B, S, D = x.shape
    M = B * S
    out_dtype = x.dtype

    # Per-generation VMEM plumbing: never hand the compiler the entire
    # physical VMEM (v7x has only 64 MiB/TC); leave headroom for its scratch.
    phys = _vmem_phys_bytes()
    vmem_limit = max(32 << 20, phys - (16 << 20))    # 48 MiB v7x, 112 MiB v5e/v6e
    budget = max(24 << 20, vmem_limit - (8 << 20))   # what our buffers may use

    x_bytes = x.dtype.itemsize
    w_bytes = w.dtype.itemsize
    o_bytes = x_bytes
    sub = 8 * max(1, 4 // x_bytes)                   # 8 f32 / 16 bf16 / 32 int8

    Dp = _round_up(D, 128)                           # lane-dense feature dim
    if tm is None:
        tm = 512 if budget >= (96 << 20) else 256    # bigger row tiles on 128 MiB parts
    tn_cap = None if tn is None else max(128, _round_up(tn, 128))
    tm_eff, tn_eff, w_buf, vmem_need = _fit_tiles(
        M, Dp, tm, tn_cap, sub, x_bytes, w_bytes, o_bytes, budget)
    n_stripes = Dp // tn_eff
    if vmem_need > budget:                           # huge-D fallback (see TODO)
        vmem_limit = min(phys - (4 << 20), vmem_need + (8 << 20))

    # Only the feature dim is zero-padded; ragged rows are handled by the grid.
    x2 = x.reshape(M, D)
    if Dp != D:
        x2 = jnp.pad(x2, ((0, 0), (0, Dp - D)))
        w = jnp.pad(w, ((0, Dp - D), (0, Dp - D)))
        b = jnp.pad(b, (0, Dp - D))
    b2 = b.reshape(1, Dp)

    def kernel(x_ref, w_ref, b_ref, o_ref):
        # x_ref: (tm, Dp) LHS rows (also the residual source)
        # w_ref: (Dp, tn) weight stripe; b_ref: (1, tn); o_ref: (tm, tn)
        acc = jnp.dot(x_ref[...], w_ref[...], preferred_element_type=jnp.float32)
        if n_stripes == 1:
            res = x_ref[...]
        else:
            # Residual column tile sliced from the already-resident LHS block
            # (128-lane aligned) instead of a second DMA'd copy of x.
            col0 = pl.multiple_of(pl.program_id(0) * tn_eff, 128)
            res = x_ref[:, pl.ds(col0, tn_eff)]
        acc = acc + b_ref[...].astype(jnp.float32) + res.astype(jnp.float32)
        o_ref[...] = acc.astype(o_ref.dtype)

    # Grid: weight stripes outer (stripe resident across inner row tiles),
    # row tiles inner (streaming axis).  Ragged last row tile is masked.
    grid = (n_stripes, pl.cdiv(M, tm_eff))
    grid_spec = pltpu.PrefetchScalarGridSpec(
        num_scalar_prefetch=0,
        grid=grid,
        in_specs=[
            # LHS rows, streamed over the row axis (double-buffered).
            pl.BlockSpec((tm_eff, Dp), lambda j, i: (i, 0)),
            # Weight stripe: constant within a j-stripe.  Single buffer when
            # resident; double buffer so the next stripe prefetches behind
            # the last row tiles of the current one when VMEM allows.
            pl.BlockSpec((Dp, tn_eff), lambda j, i: (0, j),
                         pipeline_mode=pl.Buffered(w_buf)),
            pl.BlockSpec((1, tn_eff), lambda j, i: (0, j),
                         pipeline_mode=pl.Buffered(w_buf)),
        ],
        out_specs=pl.BlockSpec((tm_eff, tn_eff), lambda j, i: (i, j)),
    )

    def call(dim_sem):
        return pl.pallas_call(
            kernel,
            out_shape=jax.ShapeDtypeStruct((M, Dp), out_dtype),
            grid_spec=grid_spec,
            compiler_params=pltpu.CompilerParams(
                dimension_semantics=dim_sem,
                vmem_limit_bytes=int(vmem_limit),
            ),
        )(x2, w, b2)

    if n_stripes > 1:
        # v7x: pin megacore sharding to the row axis so the two TensorCores
        # do not each re-stream the full LHS once per weight stripe.
        try:
            out = call(("arbitrary", "parallel"))
        except Exception:
            # Portability fallback if the backend requires parallel grid dims
            # to lead; single-TC chips (v5e/v6e) are unaffected either way.
            out = call(("parallel", "parallel"))
    else:
        # Single resident stripe: only the row axis has extent > 1, so the
        # compiler can only shard rows across cores.
        out = call(("parallel", "parallel"))

    if Dp != D:
        out = out[:, :D]
    return out.reshape(B, S, D)


if __name__ == "__main__":
    def make_inputs(key, B, S, D, dtype=jnp.float32):
        kx, kw, kb = jax.random.split(key, 3)
        x = jax.random.normal(kx, (B, S, D), dtype=jnp.float32).astype(dtype)
        w = (jax.random.normal(kw, (D, D), dtype=jnp.float32)
             / jnp.sqrt(D)).astype(dtype)
        b = (jax.random.normal(kb, (D,), dtype=jnp.float32) * 0.01).astype(dtype)
        return x, w, b

    def ref_fn(x, w, b):
        xf, wf, bf = (t.astype(jnp.float32) for t in (x, w, b))
        return (jnp.einsum("bsd,de->bse", xf, wf) + bf) + xf

    # Test 1: small gMLP-style residual block (D=32 padded to 128 lanes,
    # fully resident weight, single stripe, single row tile).
    x, w, b = make_inputs(jax.random.PRNGKey(0), 2, 8, 32)
    out = jax.block_until_ready(residual_linear(x, w, b))
    assert out.shape == x.shape
    assert jnp.allclose(out.astype(jnp.float32), ref_fn(x, w, b),
                        atol=1e-3, rtol=1e-3), "test 1 mismatch"

    # Test 2: non-128 feature dim, ragged rows (M=10, tm=8 -> masked last row
    # tile), forced 128-wide stripes (multi-stripe weight path, in-kernel
    # residual column slice, Buffered(2) stripe prefetch).
    x2_, w2_, b2_ = make_inputs(jax.random.PRNGKey(1), 2, 5, 160)
    out2 = jax.block_until_ready(residual_linear(x2_, w2_, b2_, tm=8, tn=128))
    assert out2.shape == x2_.shape
    assert jnp.allclose(out2.astype(jnp.float32), ref_fn(x2_, w2_, b2_),
                        atol=1e-3, rtol=1e-3), "test 2 mismatch"

    # Test 3: bf16 inputs (16-row sublane packing path), lane-dense D.
    x3_, w3_, b3_ = make_inputs(jax.random.PRNGKey(2), 2, 8, 128,
                                dtype=jnp.bfloat16)
    out3 = jax.block_until_ready(residual_linear(x3_, w3_, b3_))
    assert out3.dtype == jnp.bfloat16 and out3.shape == x3_.shape
    assert jnp.allclose(out3.astype(jnp.float32), ref_fn(x3_, w3_, b3_),
                        atol=1e-1, rtol=1e-1), "test 3 mismatch"

    print("KERNEL_OK")
</pallas_src>

<mosaic_0001>
module attributes {stable_mosaic.version = 11 : i64} {
  func.func @kernel(%arg0: i32, %arg1: i32, %arg2: memref<16x128xf32, #tpu.memory_space<vmem>>, %arg3: memref<128x128xf32, #tpu.memory_space<vmem>>, %arg4: memref<1x128xf32, #tpu.memory_space<vmem>>, %arg5: memref<16x128xf32, #tpu.memory_space<vmem>>) attributes {dimension_semantics = [#tpu.dimension_semantics<parallel>, #tpu.dimension_semantics<parallel>], iteration_bounds = array<i64: 1, 1>, scalar_prefetch = 0 : i64, scratch_operands = 0 : i64, tpu.core_type = #tpu.core_type<tc>, window_params = [{transform_indices = @transform_0, window_bounds = array<i64: 16, 128>}, {pipeline_mode = #tpu.pipeline_mode<synchronous>, transform_indices = @transform_1, window_bounds = array<i64: 128, 128>}, {pipeline_mode = #tpu.pipeline_mode<synchronous>, transform_indices = @transform_2, window_bounds = array<i64: 1, 128>}, {transform_indices = @transform_3, window_bounds = array<i64: 16, 128>}]} {
    %c0 = arith.constant 0 : index
    %c0_0 = arith.constant 0 : index
    %0 = vector.load %arg2[%c0, %c0_0] : memref<16x128xf32, #tpu.memory_space<vmem>>, vector<16x128xf32>
    %c0_1 = arith.constant 0 : index
    %c0_2 = arith.constant 0 : index
    %1 = vector.load %arg3[%c0_1, %c0_2] : memref<128x128xf32, #tpu.memory_space<vmem>>, vector<128x128xf32>
    %cst = arith.constant dense<0.000000e+00> : vector<16x128xf32>
    %2 = tpu.matmul %0, %1, %cst {dimension_numbers = #tpu.dot_dimension_numbers<[1], [0], [0], [1], [0, 0, 1, 1], [], []>} : vector<16x128xf32>, vector<128x128xf32>, vector<16x128xf32> -> vector<16x128xf32>
    %c0_3 = arith.constant 0 : index
    %c0_4 = arith.constant 0 : index
    %3 = vector.load %arg2[%c0_3, %c0_4] : memref<16x128xf32, #tpu.memory_space<vmem>>, vector<16x128xf32>
    %c0_5 = arith.constant 0 : index
    %c0_6 = arith.constant 0 : index
    %4 = vector.load %arg4[%c0_5, %c0_6] : memref<1x128xf32, #tpu.memory_space<vmem>>, vector<1x128xf32>
    %5 = vector.broadcast %4 : vector<1x128xf32> to vector<16x128xf32>
    %6 = arith.addf %2, %5 : vector<16x128xf32>
    %7 = arith.addf %6, %3 : vector<16x128xf32>
    %c0_7 = arith.constant 0 : index
    %c0_8 = arith.constant 0 : index
    %8 = vector.load %arg5[%c0_7, %c0_8] : memref<16x128xf32, #tpu.memory_space<vmem>>, vector<16x128xf32>
    tpu.vector_store %arg5[%c0_7, %c0_8], %7 {strides = array<i32>} : memref<16x128xf32, #tpu.memory_space<vmem>>, vector<16x128xf32>,
    return
  }
  func.func @transform_0(%arg0: i32, %arg1: i32) -> (i32, i32) {
    %c0_i32 = arith.constant 0 : i32
    %c0_i32_0 = arith.constant 0 : i32
    return %arg1, %c0_i32 : i32, i32
  }
  func.func @transform_1(%arg0: i32, %arg1: i32) -> (i32, i32) {
    %c0_i32 = arith.constant 0 : i32
    %c0_i32_0 = arith.constant 0 : i32
    return %c0_i32, %arg0 : i32, i32
  }
  func.func @transform_2(%arg0: i32, %arg1: i32) -> (i32, i32) {
    %c0_i32 = arith.constant 0 : i32
    %c0_i32_0 = arith.constant 0 : i32
    return %c0_i32, %arg0 : i32, i32
  }
  func.func @transform_3(%arg0: i32, %arg1: i32) -> (i32, i32) {
    %c0_i32 = arith.constant 0 : i32
    return %arg1, %arg0 : i32, i32
  }
}

</mosaic_0001>

<llo_original>
// kernel: tpu_custom_call.1
$region0: #{tpu_custom_call.1}
  #allocation0 [shape = 'u32[]', space=smem, size = 0x4, offset = 0x4, fixed_abs, tag = 'smem constant byte address 0x4 - core index']
  #allocation1 [shape = 'u32[72,128]{1,0:T(1,128)}', space=vmem, size = 0x9000, scoped, tag = 'internal scratch']
  %s0 = inlined_call_operand.hbm [shape: f32[16,128], index: 0, kind: input, shape index: {}]
  %s1 = inlined_call_operand.hbm [shape: f32[128,128], index: 1, kind: input, shape index: {}]
  %s2 = inlined_call_operand.vmem [shape: f32[1,128], index: 2, kind: input, shape index: {}]
  %s3 = inlined_call_operand.hbm [shape: f32[16,128], index: 3, kind: output, shape index: {}]
  %s4 = sld [smem:[#allocation0]]
  $region30: #{tpu_custom_call.1} parent=0
    _
  %s6 = ssub.s32 1, %s4
  %s7 = scalar_select 0, %s6, %s4
  $region1: #{tpu_custom_call.1} parent=0
    #allocation2 [shape = 'u8[8192]{0}', space=vmem, size = 0x2000, scoped, tag = 'input window, operand 0, single buffered']
    #allocation3 [shape = 's32[1]{0}', space=sflag, size = 0x4, scoped, tag = 'scoped memory for tpu_custom_call.1']
    #allocation4 [shape = 's32[1]{0}', space=sflag, size = 0x4, scoped, tag = 'scoped memory for tpu_custom_call.1']
    #allocation5 [shape = 'u8[65536]{0}', space=vmem, size = 0x10000, scoped, tag = 'input window, operand 1, single buffered']
    #allocation6 [shape = 's32[1]{0}', space=sflag, size = 0x4, scoped, tag = 'scoped memory for tpu_custom_call.1']
    #allocation7 [shape = 'u8[8192]{0}', space=vmem, size = 0x2000, scoped, tag = 'output window, operand 0, single buffered']
    %8 = vsyncpa [#allocation3], 0
    %9 = vsyncpa [#allocation6], 0
    %10 = vsyncpa [#allocation4], 0
    // Predicated region
    $region2: #{tpu_custom_call.1} parent=1 // pred_check
      _
    $region3: #{tpu_custom_call.1} parent=1 // pred_check_branch
      %12 = sbr.rel (0) target = $region5
    $region4: #{tpu_custom_call.1} parent=1 // pred_region
      %14 = vsyncadd [#allocation3], 0
      %s15 = sshll.u32 %s0, 4
      %s16 = int_to_ptr.hbm [resolvable:$true] %s15
      %s17 = sshll.u32 [#allocation2], 4
      %s18 = int_to_ptr.vmem [resolvable:$true] %s17
      %23 = dma.hbm_to_vmem [thread:$0]  %s16, 256, %s18, [#allocation3], 128, 128, 8
    $region5: #{tpu_custom_call.1} parent=1 // pred_fallthru
      _
    // Predicated region
    $region6: #{tpu_custom_call.1} parent=1 // pred_check
      _
    $region7: #{tpu_custom_call.1} parent=1 // pred_check_branch
      %25 = sbr.rel (0) target = $region9
    $region8: #{tpu_custom_call.1} parent=1 // pred_region
      %27 = vsyncadd [#allocation6], 0
      %s28 = sshll.u32 %s1, 4
      %s29 = int_to_ptr.hbm [resolvable:$true] %s28
      %s30 = sshll.u32 [#allocation5], 4
      %s31 = int_to_ptr.vmem [resolvable:$true] %s30
      %36 = dma.hbm_to_vmem [thread:$0]  %s29, 2048, %s31, [#allocation6], 128, 128, 8
    $region9: #{tpu_custom_call.1} parent=1 // pred_fallthru
      _
    // Predicated region
    $region10: #{tpu_custom_call.1} parent=1 // pred_check
      _
    $region11: #{tpu_custom_call.1} parent=1 // pred_check_branch
      %38 = sbr.rel (0) target = $region13
    $region12: #{tpu_custom_call.1} parent=1 // pred_region
      _
    $region13: #{tpu_custom_call.1} parent=1 // pred_fallthru
      _
    // Predicated region
    $region14: #{tpu_custom_call.1} parent=1 // pred_check
      _
    $region15: #{tpu_custom_call.1} parent=1 // pred_check_branch
      %40 = sbr.rel (0) target = $region17
    $region16: #{tpu_custom_call.1} parent=1 // pred_region
      %42 = dma.done [#allocation3], 256
    $region17: #{tpu_custom_call.1} parent=1 // pred_fallthru
      _
    // Predicated region
    $region18: #{tpu_custom_call.1} parent=1 // pred_check
      _
    $region19: #{tpu_custom_call.1} parent=1 // pred_check_branch
      %44 = sbr.rel (0) target = $region21
    $region20: #{tpu_custom_call.1} parent=1 // pred_region
      %46 = dma.done [#allocation6], 2048
    $region21: #{tpu_custom_call.1} parent=1 // pred_fallthru
      _
    %v47 = vld [vmem:[#allocation2] sm:$0xff]
    %v48 = vld [vmem:[#allocation2 + $0x8] sm:$0xff]
    %v49 = vld [vmem:[#allocation5] sm:$0xff]
    %v50 = vld [vmem:[#allocation5 + $0x8] sm:$0xff]
    %v51 = vld [vmem:[#allocation5 + $0x10] sm:$0xff]
    %v52 = vld [vmem:[#allocation5 + $0x18] sm:$0xff]
    %v53 = vld [vmem:[#allocation5 + $0x20] sm:$0xff]
    %v54 = vld [vmem:[#allocation5 + $0x28] sm:$0xff]
    %v55 = vld [vmem:[#allocation5 + $0x30] sm:$0xff]
    %v56 = vld [vmem:[#allocation5 + $0x38] sm:$0xff]
    %v57 = vld [vmem:[#allocation5 + $0x40] sm:$0xff]
    %v58 = vld [vmem:[#allocation5 + $0x48] sm:$0xff]
    %v59 = vld [vmem:[#allocation5 + $0x50] sm:$0xff]
    %v60 = vld [vmem:[#allocation5 + $0x58] sm:$0xff]
    %v61 = vld [vmem:[#allocation5 + $0x60] sm:$0xff]
    %v62 = vld [vmem:[#allocation5 + $0x68] sm:$0xff]
    %v63 = vld [vmem:[#allocation5 + $0x70] sm:$0xff]
    %v64 = vld [vmem:[#allocation5 + $0x78] sm:$0xff]
    %v65 = vld [vmem:[%s2] sm:$0x1]
    %v67 = vperm.slane %v65, 0
    %69 = vmatpush.msra.mxu0 %v64
    %70 = vmatpush.msra.mxu0 %v63
    %71 = vmatpush.msra.mxu0 %v62
    %72 = vmatpush.msra.mxu0 %v61
    %73 = vmatpush.msra.mxu0 %v60
    %74 = vmatpush.msra.mxu0 %v59
    %75 = vmatpush.msra.mxu0 %v58
    %76 = vmatpush.msra.mxu0 %v57
    %77 = vmatpush.msra.mxu0 %v56
    %78 = vmatpush.msra.mxu0 %v55
    %79 = vmatpush.msra.mxu0 %v54
    %80 = vmatpush.msra.mxu0 %v53
    %81 = vmatpush.msra.mxu0 %v52
    %82 = vmatpush.msra.mxu0 %v51
    %83 = vmatpush.msra.mxu0 %v50
    %84 = vmatpush.msra.mxu0 %v49
    %85 = vmatmul.f32.gmra.mxu0 %v47
    %v86 = vpop.f32.mrf.mxu0
    %v87 = vadd.f32 %v67, %v86
    %88 = vmatmul.f32.gmra.mxu0 %v48
    %v89 = vpop.f32.mrf.mxu0
    %v90 = vadd.f32 %v67, %v89
    %91 = vdwg.mxu0
    %v92 = vadd.f32 %v87, %v47
    %v93 = vadd.f32 %v90, %v48
    %94 = vst [vmem:[#allocation7] sm:$0xff] %v92
    %95 = vst [vmem:[#allocation7 + $0x8] sm:$0xff] %v93
    // Predicated region
    $region22: #{tpu_custom_call.1} parent=1 // pred_check
      _
    $region23: #{tpu_custom_call.1} parent=1 // pred_check_branch
      %97 = sbr.rel (0) target = $region25
    $region24: #{tpu_custom_call.1} parent=1 // pred_region
      %99 = vsyncadd [#allocation4], 0
      %s100 = sshll.u32 [#allocation7], 4
      %s101 = int_to_ptr.vmem [resolvable:$true] %s100
      %s102 = sshll.u32 %s3, 4
      %s103 = int_to_ptr.hbm [resolvable:$true] %s102
      %108 = dma.vmem_to_hbm [thread:$0]  %s101, 256, %s103, [#allocation4], 128, 128, 8
    $region25: #{tpu_custom_call.1} parent=1 // pred_fallthru
      _
    // Predicated region
    $region26: #{tpu_custom_call.1} parent=1 // pred_check
      _
    $region27: #{tpu_custom_call.1} parent=1 // pred_check_branch
      %110 = sbr.rel (0) target = $region29
    $region28: #{tpu_custom_call.1} parent=1 // pred_region
      %112 = dma.done [#allocation4], 256
    $region29: #{tpu_custom_call.1} parent=1 // pred_fallthru
      _
    %113 = vsyncpa [#allocation3], 1
    %114 = vsyncpa [#allocation6], 1
    %115 = vsyncpa [#allocation4], 1

</llo_original>
